<compile_context>
chip_gen: v7x
topology: tpu7x:2x2x1
jax: 0.10.0
libtpu: 0.0.40
codegen_flags: <defaults>
</compile_context>

<pallas_src>
import jax
import jax.numpy as jnp
from jax.experimental import pallas as pl
from jax.experimental.pallas import tpu as pltpu


# ---------------------------------------------------------------------------
# Kernel
# ---------------------------------------------------------------------------
def decoder_kernel(embed_ref, z_ref, w_ref, b_ref, out_ref):
    # z @ Wp on the MXU (Wp is W^T, block-diagonally replicated when packed).
    # Cast z to the weight dtype so the opt-in bf16 weight path hits the
    # native bf16 MXU; accumulation stays f32.
    zw = jnp.dot(z_ref[...].astype(w_ref.dtype), w_ref[...],
                 preferred_element_type=jnp.float32)
    # Residual + bias on the VPU in f32; single downcast at the store.
    out = embed_ref[...].astype(jnp.float32) + zw + b_ref[...].astype(jnp.float32)
    out_ref[...] = out.astype(out_ref.dtype)


# ---------------------------------------------------------------------------
# One-time parameter preprocessing (hoisted out of the forward pass)
# ---------------------------------------------------------------------------
def decoder_prepare_params(weight, bias, *, param_dtype=None):
    """weight: [out, in] (PyTorch Linear layout); bias: [out].

    Returns (w_packed [Dp, Dp], b_packed [1, Dp], pack_factor P) where
    Dp = P * D and P = 128 // D when D divides 128 (lane packing), else P = 1.
    """
    D = weight.shape[0]
    P = 128 // D if (D < 128 and 128 % D == 0) else 1
    Dp = P * D

    wt = weight.T  # [in, out]: packed_out = packed_z @ Wp
    if P > 1:
        # Block-diagonal replication: Wp[j*D:(j+1)*D, j*D:(j+1)*D] = W^T.
        eye = jnp.eye(P, dtype=wt.dtype)
        w_packed = jnp.einsum("pq,io->piqo", eye, wt).reshape(Dp, Dp)
        b_packed = jnp.tile(bias, P).reshape(1, Dp)
    else:
        w_packed = wt
        b_packed = bias.reshape(1, D)

    if param_dtype is not None:  # opt-in bf16 fast path (relaxes 1e-5 tol)
        w_packed = w_packed.astype(param_dtype)
    return w_packed, b_packed, P


# ---------------------------------------------------------------------------
# Forward wrapper
# ---------------------------------------------------------------------------
def decoder_forward(embed, z, w_packed, b_packed, pack, *, tm=4096):
    """embed, z: [M, D]; w_packed/b_packed/pack from decoder_prepare_params."""
    M, D = embed.shape
    P = pack
    Dp = w_packed.shape[0]
    assert Dp == P * D, "packed weight does not match embed_dim / pack factor"

    # Lane packing: [M, D] -> [M/P, P*D] is a free row-major reshape.
    # If M isn't a multiple of P, pad at most P-1 rows (negligible traffic).
    rem = M % P if P > 1 else 0
    if rem:
        pad_rows = P - rem
        embed = jnp.pad(embed, ((0, pad_rows), (0, 0)))
        z = jnp.pad(z, ((0, pad_rows), (0, 0)))
    Mtot = embed.shape[0]
    Mp = Mtot // P
    embed2 = embed.reshape(Mp, Dp)
    z2 = z.reshape(Mp, Dp)

    itemsize = embed.dtype.itemsize
    w_itemsize = w_packed.dtype.itemsize

    # --- VMEM-aware row-tile selection -------------------------------------
    try:
        vmem_cap = pltpu.get_tpu_info().vmem_capacity_bytes   # 64 MiB v7x, 128 MiB v5e/v6e
    except Exception:
        vmem_cap = 64 << 20                                    # conservative default
    act_budget = vmem_cap // 2                                  # headroom for weight + scratch
    per_row_bytes = 3 * 2 * Dp * itemsize                       # embed+z+out, double-buffered
    tm_cap = max(8, (act_budget // per_row_bytes) // 8 * 8)
    tm = min(tm, tm_cap)
    # v7x megacore: keep at least 2 row tiles when there is enough work.
    if Mp >= 4096 and tm * 2 > Mp:
        tm = max(8, ((Mp + 1) // 2 + 7) // 8 * 8)
    if tm >= Mp:
        tm = Mp  # single full-extent tile (block dim == array dim is legal)
    grid = (pl.cdiv(Mp, tm),)

    needed = per_row_bytes * tm + (Dp * Dp + Dp) * w_itemsize + (4 << 20)
    vmem_limit = int(min(vmem_cap, max(32 << 20, needed)))

    cost = pl.CostEstimate(
        flops=2 * M * D * D,
        transcendentals=0,
        bytes_accessed=3 * M * D * itemsize + (Dp * Dp + Dp) * w_itemsize)

    out = pl.pallas_call(
        decoder_kernel,
        out_shape=jax.ShapeDtypeStruct((Mp, Dp), embed.dtype),
        grid_spec=pltpu.PrefetchScalarGridSpec(
            num_scalar_prefetch=0,
            grid=grid,
            in_specs=[
                pl.BlockSpec((tm, Dp), lambda i: (i, 0)),   # embed (pipelined)
                pl.BlockSpec((tm, Dp), lambda i: (i, 0)),   # z     (pipelined)
                pl.BlockSpec((Dp, Dp), lambda i: (0, 0)),   # weight (VMEM-resident)
                pl.BlockSpec((1, Dp), lambda i: (0, 0)),    # bias   (VMEM-resident)
            ],
            out_specs=pl.BlockSpec((tm, Dp), lambda i: (i, 0)),
        ),
        compiler_params=pltpu.CompilerParams(
            dimension_semantics=("parallel",),     # row tiles independent -> 2 TCs on v7x
            vmem_limit_bytes=vmem_limit),
        cost_estimate=cost,
    )(embed2, z2, w_packed, b_packed)

    out = out.reshape(Mtot, D)
    if rem:
        out = out[:M]
    return out


# ---------------------------------------------------------------------------
# Demo / correctness check
# ---------------------------------------------------------------------------
if __name__ == "__main__":
    # Small shapes consistent with the module: batch=2, seq=8, embed_dim=32.
    batch, seq, embed_dim = 2, 8, 32
    key = jax.random.PRNGKey(0)
    k_embed, k_z, k_w, k_b = jax.random.split(key, 4)

    embed = jax.random.normal(k_embed, (batch, seq, embed_dim), dtype=jnp.float32)
    z = jax.random.normal(k_z, (batch, seq, embed_dim), dtype=jnp.float32)

    # Deterministic parameter init (PyTorch Linear layout: weight [out, in]).
    bound = 1.0 / jnp.sqrt(embed_dim)
    weight = jax.random.uniform(k_w, (embed_dim, embed_dim),
                                minval=-bound, maxval=bound, dtype=jnp.float32)
    bias = jax.random.uniform(k_b, (embed_dim,),
                              minval=-bound, maxval=bound, dtype=jnp.float32)

    # One-time parameter prep (block-diag W^T + tiled bias), then forward.
    w_packed, b_packed, pack = decoder_prepare_params(weight, bias)

    M = batch * seq
    embed_2d = embed.reshape(M, embed_dim)
    z_2d = z.reshape(M, embed_dim)

    out = decoder_forward(embed_2d, z_2d, w_packed, b_packed, pack)
    out = out.reshape(batch, seq, embed_dim)
    jax.block_until_ready(out)

    # Pure-JAX reference: embed + z @ W^T + b
    ref = embed + jnp.einsum("bsd,od->bso", z, weight) + bias
    assert jnp.allclose(out, ref, atol=1e-5, rtol=1e-5), "mismatch vs reference"

    print("KERNEL_OK")
</pallas_src>

<mosaic_0001>
module attributes {stable_mosaic.version = 11 : i64} {
  func.func @decoder_kernel(%arg0: i32, %arg1: memref<4x128xf32, #tpu.memory_space<vmem>>, %arg2: memref<4x128xf32, #tpu.memory_space<vmem>>, %arg3: memref<128x128xf32, #tpu.memory_space<vmem>>, %arg4: memref<1x128xf32, #tpu.memory_space<vmem>>, %arg5: memref<4x128xf32, #tpu.memory_space<vmem>>) attributes {dimension_semantics = [#tpu.dimension_semantics<parallel>], iteration_bounds = array<i64: 1>, scalar_prefetch = 0 : i64, scratch_operands = 0 : i64, tpu.core_type = #tpu.core_type<tc>, window_params = [{transform_indices = @transform_0, window_bounds = array<i64: 4, 128>}, {transform_indices = @transform_1, window_bounds = array<i64: 4, 128>}, {pipeline_mode = #tpu.pipeline_mode<synchronous>, transform_indices = @transform_2, window_bounds = array<i64: 128, 128>}, {pipeline_mode = #tpu.pipeline_mode<synchronous>, transform_indices = @transform_3, window_bounds = array<i64: 1, 128>}, {transform_indices = @transform_4, window_bounds = array<i64: 4, 128>}]} {
    %c0 = arith.constant 0 : index
    %c0_0 = arith.constant 0 : index
    %0 = vector.load %arg2[%c0, %c0_0] : memref<4x128xf32, #tpu.memory_space<vmem>>, vector<4x128xf32>
    %c0_1 = arith.constant 0 : index
    %c0_2 = arith.constant 0 : index
    %1 = vector.load %arg3[%c0_1, %c0_2] : memref<128x128xf32, #tpu.memory_space<vmem>>, vector<128x128xf32>
    %cst = arith.constant dense<0.000000e+00> : vector<4x128xf32>
    %2 = tpu.matmul %0, %1, %cst {dimension_numbers = #tpu.dot_dimension_numbers<[1], [0], [0], [1], [0, 0, 1, 1], [], []>} : vector<4x128xf32>, vector<128x128xf32>, vector<4x128xf32> -> vector<4x128xf32>
    %c0_3 = arith.constant 0 : index
    %c0_4 = arith.constant 0 : index
    %3 = vector.load %arg1[%c0_3, %c0_4] : memref<4x128xf32, #tpu.memory_space<vmem>>, vector<4x128xf32>
    %4 = arith.addf %3, %2 : vector<4x128xf32>
    %c0_5 = arith.constant 0 : index
    %c0_6 = arith.constant 0 : index
    %5 = vector.load %arg4[%c0_5, %c0_6] : memref<1x128xf32, #tpu.memory_space<vmem>>, vector<1x128xf32>
    %6 = vector.broadcast %5 : vector<1x128xf32> to vector<4x128xf32>
    %7 = arith.addf %4, %6 : vector<4x128xf32>
    %c0_7 = arith.constant 0 : index
    %c0_8 = arith.constant 0 : index
    %8 = vector.load %arg5[%c0_7, %c0_8] : memref<4x128xf32, #tpu.memory_space<vmem>>, vector<4x128xf32>
    tpu.vector_store %arg5[%c0_7, %c0_8], %7 {strides = array<i32>} : memref<4x128xf32, #tpu.memory_space<vmem>>, vector<4x128xf32>,
    return
  }
  func.func @transform_0(%arg0: i32) -> (i32, i32) {
    %c0_i32 = arith.constant 0 : i32
    %c0_i32_0 = arith.constant 0 : i32
    return %arg0, %c0_i32 : i32, i32
  }
  func.func @transform_1(%arg0: i32) -> (i32, i32) {
    %c0_i32 = arith.constant 0 : i32
    %c0_i32_0 = arith.constant 0 : i32
    return %arg0, %c0_i32 : i32, i32
  }
  func.func @transform_2(%arg0: i32) -> (i32, i32) {
    %c0_i32 = arith.constant 0 : i32
    %c0_i32_0 = arith.constant 0 : i32
    %c0_i32_1 = arith.constant 0 : i32
    return %c0_i32, %c0_i32_0 : i32, i32
  }
  func.func @transform_3(%arg0: i32) -> (i32, i32) {
    %c0_i32 = arith.constant 0 : i32
    %c0_i32_0 = arith.constant 0 : i32
    %c0_i32_1 = arith.constant 0 : i32
    return %c0_i32, %c0_i32_0 : i32, i32
  }
  func.func @transform_4(%arg0: i32) -> (i32, i32) {
    %c0_i32 = arith.constant 0 : i32
    %c0_i32_0 = arith.constant 0 : i32
    return %arg0, %c0_i32 : i32, i32
  }
}

</mosaic_0001>

<llo_original>
// kernel: tpu_custom_call.1
$region0: #{tpu_custom_call.1}
  #allocation0 [shape = 'u32[]', space=smem, size = 0x4, offset = 0x4, fixed_abs, tag = 'smem constant byte address 0x4 - core index']
  #allocation1 [shape = 'u32[144,128]{1,0:T(1,128)}', space=vmem, size = 0x12000, scoped, tag = 'internal scratch']
  %s0 = inlined_call_operand.hbm [shape: f32[4,128], index: 0, kind: input, shape index: {}]
  %s1 = inlined_call_operand.hbm [shape: f32[4,128], index: 1, kind: input, shape index: {}]
  %s2 = inlined_call_operand.hbm [shape: f32[128,128], index: 2, kind: input, shape index: {}]
  %s3 = inlined_call_operand.vmem [shape: f32[1,128], index: 3, kind: input, shape index: {}]
  %s4 = inlined_call_operand.hbm [shape: f32[4,128], index: 4, kind: output, shape index: {}]
  %s5 = sld [smem:[#allocation0]]
  $region38: #{tpu_custom_call.1} parent=0
    _
  %s7 = ssub.s32 1, %s5
  %s8 = scalar_select 0, %s7, %s5
  $region1: #{tpu_custom_call.1} parent=0
    #allocation2 [shape = 'u8[2048]{0}', space=vmem, size = 0x800, scoped, tag = 'input window, operand 0, single buffered']
    #allocation3 [shape = 's32[1]{0}', space=sflag, size = 0x4, scoped, tag = 'scoped memory for tpu_custom_call.1']
    #allocation4 [shape = 's32[1]{0}', space=sflag, size = 0x4, scoped, tag = 'scoped memory for tpu_custom_call.1']
    #allocation5 [shape = 'u8[2048]{0}', space=vmem, size = 0x800, scoped, tag = 'input window, operand 1, single buffered']
    #allocation6 [shape = 's32[1]{0}', space=sflag, size = 0x4, scoped, tag = 'scoped memory for tpu_custom_call.1']
    #allocation7 [shape = 'u8[65536]{0}', space=vmem, size = 0x10000, scoped, tag = 'input window, operand 2, single buffered']
    #allocation8 [shape = 'u8[2048]{0}', space=vmem, size = 0x800, scoped, tag = 'output window, operand 0, single buffered']
    %9 = vsyncpa [#allocation3], 0
    %10 = vsyncpa [#allocation6], 0
    %11 = vsyncpa [#allocation4], 0
    // Predicated region
    $region2: #{tpu_custom_call.1} parent=1 // pred_check
      _
    $region3: #{tpu_custom_call.1} parent=1 // pred_check_branch
      %13 = sbr.rel (0) target = $region5
    $region4: #{tpu_custom_call.1} parent=1 // pred_region
      %s15 = ssub.s32 64, 64
      %16 = vsyncadd [#allocation3], %s15
      %s18 = sshll.u32 [#allocation2], 4
      %s19 = int_to_ptr.vmem [resolvable:$true] %s18
      %21 = dma.hbm_to_vmem [thread:$0]  %s0, 64, %s19, [#allocation3]
    $region5: #{tpu_custom_call.1} parent=1 // pred_fallthru
      _
    // Predicated region
    $region6: #{tpu_custom_call.1} parent=1 // pred_check
      _
    $region7: #{tpu_custom_call.1} parent=1 // pred_check_branch
      %23 = sbr.rel (0) target = $region9
    $region8: #{tpu_custom_call.1} parent=1 // pred_region
      %s25 = ssub.s32 64, 64
      %26 = vsyncadd [#allocation6], %s25
      %s28 = sshll.u32 [#allocation5], 4
      %s29 = int_to_ptr.vmem [resolvable:$true] %s28
      %31 = dma.hbm_to_vmem [thread:$0]  %s1, 64, %s29, [#allocation6]
    $region9: #{tpu_custom_call.1} parent=1 // pred_fallthru
      _
    // Predicated region
    $region10: #{tpu_custom_call.1} parent=1 // pred_check
      _
    $region11: #{tpu_custom_call.1} parent=1 // pred_check_branch
      %33 = sbr.rel (0) target = $region13
    $region12: #{tpu_custom_call.1} parent=1 // pred_region
      %s35 = ssub.s32 2048, 2048
      %36 = vsyncadd [#allocation6], %s35
      %s37 = sshll.u32 [#allocation7], 4
      %s38 = int_to_ptr.vmem [resolvable:$true] %s37
      %43 = dma.hbm_to_vmem [thread:$0]  %s2, 2048, %s38, [#allocation6], 128, 128, 8
    $region13: #{tpu_custom_call.1} parent=1 // pred_fallthru
      _
    // Predicated region
    $region14: #{tpu_custom_call.1} parent=1 // pred_check
      _
    $region15: #{tpu_custom_call.1} parent=1 // pred_check_branch
      %45 = sbr.rel (0) target = $region17
    $region16: #{tpu_custom_call.1} parent=1 // pred_region
      _
    $region17: #{tpu_custom_call.1} parent=1 // pred_fallthru
      _
    // Predicated region
    $region18: #{tpu_custom_call.1} parent=1 // pred_check
      _
    $region19: #{tpu_custom_call.1} parent=1 // pred_check_branch
      %47 = sbr.rel (0) target = $region21
    $region20: #{tpu_custom_call.1} parent=1 // pred_region
      %48 = dma.done [#allocation3], 64
    $region21: #{tpu_custom_call.1} parent=1 // pred_fallthru
      _
    // Predicated region
    $region22: #{tpu_custom_call.1} parent=1 // pred_check
      _
    $region23: #{tpu_custom_call.1} parent=1 // pred_check_branch
      %50 = sbr.rel (0) target = $region25
    $region24: #{tpu_custom_call.1} parent=1 // pred_region
      %51 = dma.done [#allocation6], 64
    $region25: #{tpu_custom_call.1} parent=1 // pred_fallthru
      _
    // Predicated region
    $region26: #{tpu_custom_call.1} parent=1 // pred_check
      _
    $region27: #{tpu_custom_call.1} parent=1 // pred_check_branch
      %53 = sbr.rel (0) target = $region29
    $region28: #{tpu_custom_call.1} parent=1 // pred_region
      %54 = dma.done [#allocation6], 2048
    $region29: #{tpu_custom_call.1} parent=1 // pred_fallthru
      _
    %v55 = vld [vmem:[#allocation5] sm:$0xf]
    %v56 = vld [vmem:[#allocation7] sm:$0xff]
    %v57 = vld [vmem:[#allocation7 + $0x8] sm:$0xff]
    %v58 = vld [vmem:[#allocation7 + $0x10] sm:$0xff]
    %v59 = vld [vmem:[#allocation7 + $0x18] sm:$0xff]
    %v60 = vld [vmem:[#allocation7 + $0x20] sm:$0xff]
    %v61 = vld [vmem:[#allocation7 + $0x28] sm:$0xff]
    %v62 = vld [vmem:[#allocation7 + $0x30] sm:$0xff]
    %v63 = vld [vmem:[#allocation7 + $0x38] sm:$0xff]
    %v64 = vld [vmem:[#allocation7 + $0x40] sm:$0xff]
    %v65 = vld [vmem:[#allocation7 + $0x48] sm:$0xff]
    %v66 = vld [vmem:[#allocation7 + $0x50] sm:$0xff]
    %v67 = vld [vmem:[#allocation7 + $0x58] sm:$0xff]
    %v68 = vld [vmem:[#allocation7 + $0x60] sm:$0xff]
    %v69 = vld [vmem:[#allocation7 + $0x68] sm:$0xff]
    %v70 = vld [vmem:[#allocation7 + $0x70] sm:$0xff]
    %v71 = vld [vmem:[#allocation7 + $0x78] sm:$0xff]
    %72 = vmatprep.subr.mxu0 0.0
    %73 = vmatpush1.msra.mxu0 %v56
    %74 = vmatprep.subr.mxu0 0.0
    %75 = vmatpush1.msra.mxu0 %v57
    %76 = vmatprep.subr.mxu0 0.0
    %77 = vmatpush1.msra.mxu0 %v58
    %78 = vmatprep.subr.mxu0 0.0
    %79 = vmatpush1.msra.mxu0 %v59
    %80 = vmatprep.subr.mxu0 0.0
    %81 = vmatpush1.msra.mxu0 %v60
    %82 = vmatprep.subr.mxu0 0.0
    %83 = vmatpush1.msra.mxu0 %v61
    %84 = vmatprep.subr.mxu0 0.0
    %85 = vmatpush1.msra.mxu0 %v62
    %86 = vmatprep.subr.mxu0 0.0
    %87 = vmatpush1.msra.mxu0 %v63
    %88 = vmatprep.subr.mxu0 0.0
    %89 = vmatpush1.msra.mxu0 %v64
    %90 = vmatprep.subr.mxu0 0.0
    %91 = vmatpush1.msra.mxu0 %v65
    %92 = vmatprep.subr.mxu0 0.0
    %93 = vmatpush1.msra.mxu0 %v66
    %94 = vmatprep.subr.mxu0 0.0
    %95 = vmatpush1.msra.mxu0 %v67
    %96 = vmatprep.subr.mxu0 0.0
    %97 = vmatpush1.msra.mxu0 %v68
    %98 = vmatprep.subr.mxu0 0.0
    %99 = vmatpush1.msra.mxu0 %v69
    %100 = vmatprep.subr.mxu0 0.0
    %101 = vmatpush1.msra.mxu0 %v70
    %102 = vmatprep.subr.mxu0 0.0
    %103 = vmatpush1.msra.mxu0 %v71
    %104 = vmatprep.subr.mxu0 0.0
    %105 = vmatpush1.msra.mxu0 0.0
    %106 = vmatprep.subr.mxu0 0.0
    %107 = vmatpush1.msra.mxu0 0.0
    %108 = vmatprep.subr.mxu0 0.0
    %109 = vmatpush1.msra.mxu0 0.0
    %110 = vmatprep.subr.mxu0 0.0
    %111 = vmatpush1.msra.mxu0 0.0
    %112 = vmatprep.subr.mxu0 0.0
    %113 = vmatpush1.msra.mxu0 0.0
    %114 = vmatprep.subr.mxu0 0.0
    %115 = vmatpush1.msra.mxu0 0.0
    %116 = vmatprep.subr.mxu0 0.0
    %117 = vmatpush1.msra.mxu0 0.0
    %118 = vmatprep.subr.mxu0 0.0
    %119 = vmatpush1.msra.mxu0 0.0
    %120 = vmatprep.subr.mxu0 0.0
    %121 = vmatpush1.msra.mxu0 0.0
    %122 = vmatprep.subr.mxu0 0.0
    %123 = vmatpush1.msra.mxu0 0.0
    %124 = vmatprep.subr.mxu0 0.0
    %125 = vmatpush1.msra.mxu0 0.0
    %126 = vmatprep.subr.mxu0 0.0
    %127 = vmatpush1.msra.mxu0 0.0
    %128 = vmatprep.subr.mxu0 0.0
    %129 = vmatpush1.msra.mxu0 0.0
    %130 = vmatprep.subr.mxu0 0.0
    %131 = vmatpush1.msra.mxu0 0.0
    %132 = vmatprep.subr.mxu0 0.0
    %133 = vmatpush1.msra.mxu0 0.0
    %134 = vmatprep.subr.mxu0 0.0
    %135 = vmatpush1.msra.mxu0 0.0
    %136 = vmatprep.mubr.f32.mxu0 0.0
    %137 = vmatmul.mubr.f32.gmra.mrb[0].mxu0 %v55
    %v138 = vpop.f32.mrb[0].mxu0
    %v139 = vadd.f32 0.0, %v138
    %v140 = vpop.f32.mrb[0].mxu0
    %141 = vdwg.mxu0
    %v142 = vld [vmem:[#allocation2] sm:$0xf]
    %v143 = vadd.f32 %v142, %v139
    %v144 = vld [vmem:[%s3] sm:$0x1]
    %v146 = vlaneseq
    %v147 = vshrl.u32 %v146, 7
    %v148 = vsub.s32 0, %v147
    %v149 = vrot.slane %v144, %v148
    %v151 = vadd.f32 %v143, %v149
    %152 = vst [vmem:[#allocation8] sm:$0xf] %v151
    // Predicated region
    $region30: #{tpu_custom_call.1} parent=1 // pred_check
      _
    $region31: #{tpu_custom_call.1} parent=1 // pred_check_branch
      %154 = sbr.rel (0) target = $region33
    $region32: #{tpu_custom_call.1} parent=1 // pred_region
      %s156 = ssub.s32 64, 64
      %157 = vsyncadd [#allocation4], %s156
      %s159 = sshll.u32 [#allocation8], 4
      %s160 = int_to_ptr.vmem [resolvable:$true] %s159
      %162 = dma.vmem_to_hbm [thread:$0]  %s160, 64, %s4, [#allocation4]
    $region33: #{tpu_custom_call.1} parent=1 // pred_fallthru
      _
    // Predicated region
    $region34: #{tpu_custom_call.1} parent=1 // pred_check
      _
    $region35: #{tpu_custom_call.1} parent=1 // pred_check_branch
      %164 = sbr.rel (0) target = $region37
    $region36: #{tpu_custom_call.1} parent=1 // pred_region
      %165 = dma.done [#allocation4], 64
    $region37: #{tpu_custom_call.1} parent=1 // pred_fallthru
      _
    %166 = vsyncpa [#allocation3], 1
    %167 = vsyncpa [#allocation6], 1
    %168 = vsyncpa [#allocation4], 1

</llo_original>
